<compile_context>
chip_gen: v5e
topology: v5e:2x2
jax: 0.10.0
libtpu: 0.0.40
codegen_flags: <defaults>
</compile_context>

<pallas_src>
import jax
import jax.numpy as jnp
from jax.experimental import pallas as pl
from jax.experimental.pallas import tpu as pltpu

LANE = 128


def conv1x1_bn_kernel(x_ref, w_ref, b_ref, o_ref):
    # x_ref: (Bt, C_in, TS)   w_ref: (C_out, C_in)   b_ref: (C_out, 1)
    # o_ref: (Bt, C_out, TS)
    w = w_ref[...]
    bias = b_ref[...]
    # Bt is a small static batch tile -> unrolled loop of clean 2-D MXU matmuls
    # with f32 accumulation; bias add stays in f32 before the final cast.
    for bb in range(x_ref.shape[0]):
        y = jnp.dot(w, x_ref[bb], preferred_element_type=jnp.float32)
        o_ref[bb] = (y + bias).astype(o_ref.dtype)


def _round_up(v, m):
    return ((v + m - 1) // m) * m


def _default_spatial_cap():
    """Per-generation cap on spatial lanes per grid step (mem-bound kernel)."""
    try:
        kind = jax.devices()[0].device_kind.lower()
    except Exception:
        kind = ""
    # v7x: 64 MiB VMEM/core -> ~32K-lane tiles (~12.6 MiB pipelined).
    # v5e/v6e: 128 MiB VMEM -> ~64K-lane tiles (~25 MiB pipelined).
    if "v7" in kind:
        return 32768
    return 65536


def conv_bn_forward(x, conv_w, gamma, beta, running_mean, running_var,
                    eps=1e-5, tile_spatial=None):
    """Fused Conv2d(1x1, bias=None) + BatchNorm2d (inference) forward.

    x:      (B, C_in, H, W)
    conv_w: (C_out, C_in, 1, 1)
    gamma/beta/running_mean/running_var: (C_out,)
    returns (B, C_out, H, W), same dtype as x (bf16 x -> bf16 out works too).
    """
    B, C_in, H, W = x.shape
    C_out = conv_w.shape[0]

    # --- Fuse conv + BN into one affine map (once, outside the kernel) -------
    w2d = conv_w.reshape(C_out, C_in).astype(jnp.float32)
    scale = gamma.astype(jnp.float32) * jax.lax.rsqrt(
        running_var.astype(jnp.float32) + eps)
    w_fused = (scale[:, None] * w2d).astype(x.dtype)            # (C_out, C_in)
    b_fused = (beta.astype(jnp.float32)
               - scale * running_mean.astype(jnp.float32)).reshape(C_out, 1)

    # --- Lane-dense layout: spatial on lanes, channels on sublanes -----------
    HW = H * W
    xr = x.reshape(B, C_in, HW)

    ts_cap = int(tile_spatial) if tile_spatial is not None else _default_spatial_cap()
    ts_cap = max(LANE, _round_up(ts_cap, LANE))

    # Spatial tile: multiple of 128 (or the full extent when HW < 128).
    # No wrapper-side jnp.pad / output slice: Pallas masks the ragged last
    # tile, safe because there is no reduction across the spatial axis.
    if HW % LANE == 0:
        TS = min(ts_cap, HW)
    elif HW < LANE:
        TS = HW
    else:
        TS = min(ts_cap, (HW // LANE) * LANE)
    grid_s = pl.cdiv(HW, TS)

    # Batch blocking: with a single spatial tile, pack several batches per
    # grid step (exact divisor -> no ragged batch blocks) to amortize
    # per-step fixed + DMA-issue overhead.
    if grid_s == 1:
        Bt = max(1, min(B, ts_cap // max(TS, 1)))
        while B % Bt != 0:
            Bt -= 1
    else:
        Bt = 1
    grid_b = B // Bt

    # Scoped-VMEM budget: double-buffered input+output tiles (sublanes padded
    # 20->24) with ~2x headroom; clamps to [32 MiB, 96 MiB]. This lifts the
    # v5e 16 MiB default and stays inside v7x's 64 MiB physical VMEM.
    elem = jnp.dtype(x.dtype).itemsize
    tile_bytes = Bt * TS * (_round_up(C_in, 8) + _round_up(C_out, 8)) * elem
    vmem_limit = int(min(max(4 * tile_bytes + (4 << 20), 32 << 20), 96 << 20))

    out = pl.pallas_call(
        conv1x1_bn_kernel,
        out_shape=jax.ShapeDtypeStruct((B, C_out, HW), x.dtype),
        grid=(grid_b, grid_s),
        in_specs=[
            pl.BlockSpec((Bt, C_in, TS), lambda b, s: (b, 0, s)),
            pl.BlockSpec((C_out, C_in), lambda b, s: (0, 0)),   # VMEM-resident
            pl.BlockSpec((C_out, 1), lambda b, s: (0, 0)),      # VMEM-resident
        ],
        out_specs=pl.BlockSpec((Bt, C_out, TS), lambda b, s: (b, 0, s)),
        compiler_params=pltpu.CompilerParams(
            dimension_semantics=("parallel", "parallel"),
            vmem_limit_bytes=vmem_limit),
    )(xr, w_fused, b_fused)

    return out.reshape(B, C_out, H, W)


def init_params(key, c_in=20, c_out=20):
    k1, k2, k3, k4, k5 = jax.random.split(key, 5)
    # Conv2d default-ish init (kaiming-uniform bound for fan_in = c_in * 1 * 1)
    bound = 1.0 / jnp.sqrt(float(c_in))
    conv_w = jax.random.uniform(k1, (c_out, c_in, 1, 1), jnp.float32,
                                -bound, bound)
    # Non-trivial BN parameters/statistics so the fusion is actually tested.
    gamma = jax.random.uniform(k2, (c_out,), jnp.float32, 0.5, 1.5)
    beta = jax.random.uniform(k3, (c_out,), jnp.float32, -0.5, 0.5)
    running_mean = jax.random.normal(k4, (c_out,), jnp.float32) * 0.1
    running_var = jax.random.uniform(k5, (c_out,), jnp.float32, 0.5, 1.5)
    return conv_w, gamma, beta, running_mean, running_var


if __name__ == "__main__":
    key = jax.random.PRNGKey(0)
    kx, kp = jax.random.split(key)

    batch, channels, H, W = 2, 20, 16, 16
    x = jax.random.normal(kx, (batch, channels, H, W), jnp.float32)
    conv_w, gamma, beta, running_mean, running_var = init_params(kp)

    out = conv_bn_forward(x, conv_w, gamma, beta, running_mean, running_var)
    out = jax.block_until_ready(out)

    # Pure-JAX reference: 1x1 conv (no bias) then BatchNorm2d in eval mode.
    # TODO(synk): training-mode BatchNorm (batch statistics) is not implemented;
    # this matches the standard conv+bn-fused inference forward.
    eps = 1e-5
    w2d = conv_w.reshape(channels, channels)
    y = jnp.einsum("oi,bihw->bohw", w2d, x)
    ref = (gamma[None, :, None, None]
           * (y - running_mean[None, :, None, None])
           * jax.lax.rsqrt(running_var + eps)[None, :, None, None]
           + beta[None, :, None, None])

    assert out.shape == (batch, channels, H, W)
    assert jnp.allclose(out, ref, atol=1e-4, rtol=1e-4)
    print("KERNEL_OK")
</pallas_src>

<mosaic_0001>
module attributes {stable_mosaic.version = 11 : i64} {
  func.func @conv1x1_bn_kernel(%arg0: i32, %arg1: i32, %arg2: memref<2x20x256xf32, #tpu.memory_space<vmem>>, %arg3: memref<20x20xf32, #tpu.memory_space<vmem>>, %arg4: memref<20x1xf32, #tpu.memory_space<vmem>>, %arg5: memref<2x20x256xf32, #tpu.memory_space<vmem>>) attributes {dimension_semantics = [#tpu.dimension_semantics<parallel>, #tpu.dimension_semantics<parallel>], iteration_bounds = array<i64: 1, 1>, scalar_prefetch = 0 : i64, scratch_operands = 0 : i64, tpu.core_type = #tpu.core_type<tc>, window_params = [{transform_indices = @transform_0, window_bounds = array<i64: 2, 20, 256>}, {pipeline_mode = #tpu.pipeline_mode<synchronous>, transform_indices = @transform_1, window_bounds = array<i64: 20, 20>}, {pipeline_mode = #tpu.pipeline_mode<synchronous>, transform_indices = @transform_2, window_bounds = array<i64: 20, 1>}, {transform_indices = @transform_3, window_bounds = array<i64: 2, 20, 256>}]} {
    %c0 = arith.constant 0 : index
    %c0_0 = arith.constant 0 : index
    %0 = vector.load %arg3[%c0, %c0_0] : memref<20x20xf32, #tpu.memory_space<vmem>>, vector<20x20xf32>
    %c0_1 = arith.constant 0 : index
    %c0_2 = arith.constant 0 : index
    %1 = vector.load %arg4[%c0_1, %c0_2] : memref<20x1xf32, #tpu.memory_space<vmem>>, vector<20x1xf32>
    %c0_3 = arith.constant 0 : index
    %c0_4 = arith.constant 0 : index
    %c0_5 = arith.constant 0 : index
    %2 = vector.load %arg2[%c0_3, %c0_4, %c0_5] : memref<2x20x256xf32, #tpu.memory_space<vmem>>, vector<1x20x256xf32>
    %3 = vector.shape_cast %2 : vector<1x20x256xf32> to vector<20x256xf32>
    %cst = arith.constant dense<0.000000e+00> : vector<20x256xf32>
    %4 = tpu.matmul %0, %3, %cst {dimension_numbers = #tpu.dot_dimension_numbers<[1], [0], [0], [1], [0, 0, 1, 1], [], []>} : vector<20x20xf32>, vector<20x256xf32>, vector<20x256xf32> -> vector<20x256xf32>
    %5 = vector.broadcast %1 : vector<20x1xf32> to vector<20x256xf32>
    %6 = arith.addf %4, %5 : vector<20x256xf32>
    %c0_6 = arith.constant 0 : index
    %c0_7 = arith.constant 0 : index
    %c0_8 = arith.constant 0 : index
    %7 = vector.load %arg5[%c0_6, %c0_7, %c0_8] : memref<2x20x256xf32, #tpu.memory_space<vmem>>, vector<1x20x256xf32>
    %8 = vector.shape_cast %7 : vector<1x20x256xf32> to vector<20x256xf32>
    %9 = vector.shape_cast %6 : vector<20x256xf32> to vector<1x20x256xf32>
    tpu.vector_store %arg5[%c0_6, %c0_7, %c0_8], %9 {strides = array<i32>} : memref<2x20x256xf32, #tpu.memory_space<vmem>>, vector<1x20x256xf32>,
    %c1 = arith.constant 1 : index
    %c0_9 = arith.constant 0 : index
    %c0_10 = arith.constant 0 : index
    %10 = vector.load %arg2[%c1, %c0_9, %c0_10] : memref<2x20x256xf32, #tpu.memory_space<vmem>>, vector<1x20x256xf32>
    %11 = vector.shape_cast %10 : vector<1x20x256xf32> to vector<20x256xf32>
    %cst_11 = arith.constant dense<0.000000e+00> : vector<20x256xf32>
    %12 = tpu.matmul %0, %11, %cst_11 {dimension_numbers = #tpu.dot_dimension_numbers<[1], [0], [0], [1], [0, 0, 1, 1], [], []>} : vector<20x20xf32>, vector<20x256xf32>, vector<20x256xf32> -> vector<20x256xf32>
    %13 = vector.broadcast %1 : vector<20x1xf32> to vector<20x256xf32>
    %14 = arith.addf %12, %13 : vector<20x256xf32>
    %c1_12 = arith.constant 1 : index
    %c0_13 = arith.constant 0 : index
    %c0_14 = arith.constant 0 : index
    %15 = vector.load %arg5[%c1_12, %c0_13, %c0_14] : memref<2x20x256xf32, #tpu.memory_space<vmem>>, vector<1x20x256xf32>
    %16 = vector.shape_cast %15 : vector<1x20x256xf32> to vector<20x256xf32>
    %17 = vector.shape_cast %14 : vector<20x256xf32> to vector<1x20x256xf32>
    tpu.vector_store %arg5[%c1_12, %c0_13, %c0_14], %17 {strides = array<i32>} : memref<2x20x256xf32, #tpu.memory_space<vmem>>, vector<1x20x256xf32>,
    return
  }
  func.func @transform_0(%arg0: i32, %arg1: i32) -> (i32, i32, i32) {
    %c0_i32 = arith.constant 0 : i32
    %c0_i32_0 = arith.constant 0 : i32
    return %arg0, %c0_i32, %arg1 : i32, i32, i32
  }
  func.func @transform_1(%arg0: i32, %arg1: i32) -> (i32, i32) {
    %c0_i32 = arith.constant 0 : i32
    %c0_i32_0 = arith.constant 0 : i32
    %c0_i32_1 = arith.constant 0 : i32
    return %c0_i32, %c0_i32_0 : i32, i32
  }
  func.func @transform_2(%arg0: i32, %arg1: i32) -> (i32, i32) {
    %c0_i32 = arith.constant 0 : i32
    %c0_i32_0 = arith.constant 0 : i32
    %c0_i32_1 = arith.constant 0 : i32
    return %c0_i32, %c0_i32_0 : i32, i32
  }
  func.func @transform_3(%arg0: i32, %arg1: i32) -> (i32, i32, i32) {
    %c0_i32 = arith.constant 0 : i32
    %c0_i32_0 = arith.constant 0 : i32
    return %arg0, %c0_i32, %arg1 : i32, i32, i32
  }
}

</mosaic_0001>

<llo_original>
// kernel: tpu_custom_call.1
$region0: #{tpu_custom_call.1}
  #allocation0 [shape = 'u32[]', space=smem, size = 0x4, offset = 0x4, fixed_abs, tag = 'smem constant byte address 0x4 - core index']
  #allocation1 [shape = 'u32[72,128]{1,0:T(1,128)}', space=vmem, size = 0x9000, scoped, tag = 'internal scratch']
  %s0 = inlined_call_operand.vmem [shape: f32[2,20,256], index: 0, kind: input, shape index: {}]
  %s1 = inlined_call_operand.vmem [shape: f32[20,20], index: 1, kind: input, shape index: {}]
  %s2 = inlined_call_operand.vmem [shape: f32[20,1], index: 2, kind: input, shape index: {}]
  %s3 = inlined_call_operand.vmem [shape: f32[2,20,256], index: 3, kind: output, shape index: {}]
  %s4 = sld [smem:[#allocation0]]
  $region22: #{tpu_custom_call.1} parent=0
    _
  %s6 = ssub.s32 1, %s4
  %s7 = scalar_select 0, %s6, %s4
  // Predicated region
  $region2: #{tpu_custom_call.1} parent=0 // pred_check
    _
  $region3: #{tpu_custom_call.1} parent=0 // pred_check_branch
    %9 = sbr.rel (0) target = $region5
  $region4: #{tpu_custom_call.1} parent=0 // pred_region
    _
  $region5: #{tpu_custom_call.1} parent=0 // pred_fallthru
    _
  // Predicated region
  $region6: #{tpu_custom_call.1} parent=0 // pred_check
    _
  $region7: #{tpu_custom_call.1} parent=0 // pred_check_branch
    %11 = sbr.rel (0) target = $region9
  $region8: #{tpu_custom_call.1} parent=0 // pred_region
    _
  $region9: #{tpu_custom_call.1} parent=0 // pred_fallthru
    _
  // Predicated region
  $region10: #{tpu_custom_call.1} parent=0 // pred_check
    _
  $region11: #{tpu_custom_call.1} parent=0 // pred_check_branch
    %13 = sbr.rel (0) target = $region13
  $region12: #{tpu_custom_call.1} parent=0 // pred_region
    _
  $region13: #{tpu_custom_call.1} parent=0 // pred_fallthru
    _
  %v14 = vld [vmem:[%s1] sm:$0xff]
  %v15 = vld [vmem:[%s1 + $0x8] sm:$0xff]
  %v16 = vld [vmem:[%s1 + $0x10] sm:$0xf]
  %v17 = vld [vmem:[%s2] sm:$0xff]
  %v18 = vld [vmem:[%s2 + $0x8] sm:$0xff]
  %v19 = vld [vmem:[%s2 + $0x10] sm:$0xf]
  %v20 = vld [vmem:[%s0] sm:$0xff]
  %v21 = vld [vmem:[%s0 + $0x8] sm:$0xff]
  %v22 = vld [vmem:[%s0 + $0x10] sm:$0xff]
  %v23 = vld [vmem:[%s0 + $0x18] sm:$0xff]
  %v24 = vld [vmem:[%s0 + $0x20] sm:$0xf]
  %v25 = vld [vmem:[%s0 + $0x28] sm:$0xf]
  %27 = vset.pattern.permute.xlu0 0
  %28 = vperm.xlu0 %27, %v17
  %v29 = vpop.permute.xlu0 %28
  %32 = vset.pattern.permute.xlu0 0
  %33 = vperm.xlu0 %32, %v18
  %v34 = vpop.permute.xlu0 %33
  %37 = vset.pattern.permute.xlu0 0
  %38 = vperm.xlu0 %37, %v19
  %v39 = vpop.permute.xlu0 %38
  %vm41 = vcmask 162816
  %v43 = vsel %vm41, %v14, 0
  %v46 = vsel %vm41, %v15, 0
  %v49 = vsel %vm41, %v16, 0
  %vm51 = vcmask 1043456
  %v53 = vsel %vm51, %v24, 0
  %v56 = vsel %vm51, %v25, 0
  %58 = vmatpush.msra.mxu0 0.0
  %59 = vmatpush.msra.mxu0 0.0
  %60 = vmatpush.msra.mxu0 0.0
  %61 = vmatpush.msra.mxu0 0.0
  %62 = vmatpush.msra.mxu0 0.0
  %63 = vmatpush.msra.mxu0 0.0
  %64 = vmatpush.msra.mxu0 0.0
  %65 = vmatpush.msra.mxu0 0.0
  %66 = vmatpush.msra.mxu0 0.0
  %67 = vmatpush.msra.mxu0 0.0
  %68 = vmatpush.msra.mxu0 0.0
  %69 = vmatpush.msra.mxu0 0.0
  %70 = vmatpush.msra.mxu0 0.0
  %71 = vmatpush.msra.mxu0 %v53
  %72 = vmatpush.msra.mxu0 %v22
  %73 = vmatpush.msra.mxu0 %v20
  %74 = vmatmul.f32.gmra.mxu0 %v43
  %v75 = vpop.f32.mrf.mxu0
  %v76 = vadd.f32 %v29, %v75
  %77 = vmatmul.f32.gmra.mxu0 %v46
  %v78 = vpop.f32.mrf.mxu0
  %v79 = vadd.f32 %v34, %v78
  %80 = vmatmul.f32.gmra.mxu0 %v49
  %v81 = vpop.f32.mrf.mxu0
  %v82 = vadd.f32 %v39, %v81
  %83 = vdwg.mxu0
  %84 = vmatpush.msra.mxu0 0.0
  %85 = vmatpush.msra.mxu0 0.0
  %86 = vmatpush.msra.mxu0 0.0
  %87 = vmatpush.msra.mxu0 0.0
  %88 = vmatpush.msra.mxu0 0.0
  %89 = vmatpush.msra.mxu0 0.0
  %90 = vmatpush.msra.mxu0 0.0
  %91 = vmatpush.msra.mxu0 0.0
  %92 = vmatpush.msra.mxu0 0.0
  %93 = vmatpush.msra.mxu0 0.0
  %94 = vmatpush.msra.mxu0 0.0
  %95 = vmatpush.msra.mxu0 0.0
  %96 = vmatpush.msra.mxu0 0.0
  %97 = vmatpush.msra.mxu0 %v56
  %98 = vmatpush.msra.mxu0 %v23
  %99 = vmatpush.msra.mxu0 %v21
  %100 = vmatmul.f32.gmra.mxu0 %v43
  %v101 = vpop.f32.mrf.mxu0
  %v102 = vadd.f32 %v29, %v101
  %103 = vmatmul.f32.gmra.mxu0 %v46
  %v104 = vpop.f32.mrf.mxu0
  %v105 = vadd.f32 %v34, %v104
  %106 = vmatmul.f32.gmra.mxu0 %v49
  %v107 = vpop.f32.mrf.mxu0
  %v108 = vadd.f32 %v39, %v107
  %109 = vdwg.mxu0
  %110 = vst [vmem:[%s3] sm:$0xff] %v76
  %111 = vst [vmem:[%s3 + $0x8] sm:$0xff] %v102
  %112 = vst [vmem:[%s3 + $0x10] sm:$0xff] %v79
  %113 = vst [vmem:[%s3 + $0x18] sm:$0xff] %v105
  %114 = vst [vmem:[%s3 + $0x20] sm:$0xf] %v82
  %115 = vst [vmem:[%s3 + $0x28] sm:$0xf] %v108
  %s116 = scalar_lea.vmem %s0, 48
  %v117 = vld [vmem:[%s116] sm:$0xff]
  %v118 = vld [vmem:[%s116 + $0x8] sm:$0xff]
  %v119 = vld [vmem:[%s116 + $0x10] sm:$0xff]
  %v120 = vld [vmem:[%s116 + $0x18] sm:$0xff]
  %v121 = vld [vmem:[%s116 + $0x20] sm:$0xf]
  %v122 = vld [vmem:[%s116 + $0x28] sm:$0xf]
  %v124 = vsel %vm51, %v121, 0
  %v127 = vsel %vm51, %v122, 0
  %129 = vmatpush.msra.mxu0 0.0
  %130 = vmatpush.msra.mxu0 0.0
  %131 = vmatpush.msra.mxu0 0.0
  %132 = vmatpush.msra.mxu0 0.0
  %133 = vmatpush.msra.mxu0 0.0
  %134 = vmatpush.msra.mxu0 0.0
  %135 = vmatpush.msra.mxu0 0.0
  %136 = vmatpush.msra.mxu0 0.0
  %137 = vmatpush.msra.mxu0 0.0
  %138 = vmatpush.msra.mxu0 0.0
  %139 = vmatpush.msra.mxu0 0.0
  %140 = vmatpush.msra.mxu0 0.0
  %141 = vmatpush.msra.mxu0 0.0
  %142 = vmatpush.msra.mxu0 %v124
  %143 = vmatpush.msra.mxu0 %v119
  %144 = vmatpush.msra.mxu0 %v117
  %145 = vmatmul.f32.gmra.mxu0 %v43
  %v146 = vpop.f32.mrf.mxu0
  %v147 = vadd.f32 %v29, %v146
  %148 = vmatmul.f32.gmra.mxu0 %v46
  %v149 = vpop.f32.mrf.mxu0
  %v150 = vadd.f32 %v34, %v149
  %151 = vmatmul.f32.gmra.mxu0 %v49
  %v152 = vpop.f32.mrf.mxu0
  %v153 = vadd.f32 %v39, %v152
  %154 = vdwg.mxu0
  %155 = vmatpush.msra.mxu0 0.0
  %156 = vmatpush.msra.mxu0 0.0
  %157 = vmatpush.msra.mxu0 0.0
  %158 = vmatpush.msra.mxu0 0.0
  %159 = vmatpush.msra.mxu0 0.0
  %160 = vmatpush.msra.mxu0 0.0
  %161 = vmatpush.msra.mxu0 0.0
  %162 = vmatpush.msra.mxu0 0.0
  %163 = vmatpush.msra.mxu0 0.0
  %164 = vmatpush.msra.mxu0 0.0
  %165 = vmatpush.msra.mxu0 0.0
  %166 = vmatpush.msra.mxu0 0.0
  %167 = vmatpush.msra.mxu0 0.0
  %168 = vmatpush.msra.mxu0 %v127
  %169 = vmatpush.msra.mxu0 %v120
  %170 = vmatpush.msra.mxu0 %v118
  %171 = vmatmul.f32.gmra.mxu0 %v43
  %v172 = vpop.f32.mrf.mxu0
  %v173 = vadd.f32 %v29, %v172
  %174 = vmatmul.f32.gmra.mxu0 %v46
  %v175 = vpop.f32.mrf.mxu0
  %v176 = vadd.f32 %v34, %v175
  %177 = vmatmul.f32.gmra.mxu0 %v49
  %v178 = vpop.f32.mrf.mxu0
  %v179 = vadd.f32 %v39, %v178
  %180 = vdwg.mxu0
  %s181 = scalar_lea.vmem %s3, 48
  %182 = vst [vmem:[%s181] sm:$0xff] %v147
  %183 = vst [vmem:[%s181 + $0x8] sm:$0xff] %v173
  %184 = vst [vmem:[%s181 + $0x10] sm:$0xff] %v150
  %185 = vst [vmem:[%s181 + $0x18] sm:$0xff] %v176
  %186 = vst [vmem:[%s181 + $0x20] sm:$0xf] %v153
  %187 = vst [vmem:[%s181 + $0x28] sm:$0xf] %v179
  // Predicated region
  $region14: #{tpu_custom_call.1} parent=0 // pred_check
    _
  $region15: #{tpu_custom_call.1} parent=0 // pred_check_branch
    %189 = sbr.rel (0) target = $region17
  $region16: #{tpu_custom_call.1} parent=0 // pred_region
    _
  $region17: #{tpu_custom_call.1} parent=0 // pred_fallthru
    _
  // Predicated region
  $region18: #{tpu_custom_call.1} parent=0 // pred_check
    _
  $region19: #{tpu_custom_call.1} parent=0 // pred_check_branch
    %191 = sbr.rel (0) target = $region21
  $region20: #{tpu_custom_call.1} parent=0 // pred_region
    _
  $region21: #{tpu_custom_call.1} parent=0 // pred_fallthru
    _

</llo_original>
